<compile_context>
chip_gen: v7x
topology: tpu7x:2x2x1
jax: 0.10.0
libtpu: 0.0.40
codegen_flags: <defaults>
</compile_context>

<pallas_src>
import functools

import jax
import jax.numpy as jnp
import numpy as np
from jax import lax
from jax.experimental import pallas as pl
from jax.experimental.pallas import tpu as pltpu


def _banded_conv_weight(w_hwio, width):
    """Fold kw taps + W zero-padding of a 3x3 'same' conv into a matrix.

    Returns big of shape (3*W*Cin, W*Cout) such that
        out_row[h] = sum_dh  in_row_padded[h + dh - 1] @ big[dh-block]
    where in_row is the (W*Cin,) lane-dense row and the W-halo taps simply
    have no source row (implicit zero padding in W).
    """
    kh, kw, cin, cout = w_hwio.shape
    # shift[dw, wi, wo] = 1  iff  wi == wo + dw - 1
    shift = jnp.stack(
        [jnp.eye(width, k=1 - dw, dtype=w_hwio.dtype) for dw in range(kw)])
    big = jnp.einsum("dio,hdce->hicoe", shift, w_hwio)  # (kh, W, Cin, W, Cout)
    return big.reshape(kh * width * cin, width * cout)


def _conv_residual_kernel(nb, H, WC, x_ref, wb1_ref, b1_ref, wb2_ref, b2_ref,
                          out_ref):
    # x_ref  : (nb, H, WC) f32  lane-dense input block (channels folded in WC)
    # wb*_ref: (3*WC, WC)  bf16 banded conv weights (dh-major rows)
    # b*_ref : (1, WC)     f32  bias tiled over W
    # out_ref: (nb, H, WC) f32

    def row_im2col(a):
        # (H, WC) -> (H, 3*WC): [row h-1 | row h | row h+1] with zero halo rows.
        zero = jnp.zeros((1, WC), a.dtype)
        up = jnp.concatenate([zero, a[:H - 1]], axis=0)   # row h-1 (zero at h=0)
        dn = jnp.concatenate([a[1:], zero], axis=0)       # row h+1 (zero at h=H-1)
        return jnp.concatenate([up, a, dn], axis=1)

    x = x_ref[...]                                        # (nb, H, WC) f32
    xr = jnp.maximum(x, 0.0)                              # relu once, lane-dense

    # ---- conv1(relu(x)): single MXU matmul, f32 accumulation ----
    m1 = jnp.concatenate([row_im2col(xr[n]) for n in range(nb)], axis=0)
    h = jnp.dot(m1.astype(jnp.bfloat16), wb1_ref[...],
                preferred_element_type=jnp.float32) + b1_ref[...]
    h = jnp.maximum(h, 0.0)                               # relu; dropout(p=0)=id

    # ---- conv2(relu(h)): single MXU matmul ----
    m2 = jnp.concatenate(
        [row_im2col(h[n * H:(n + 1) * H]) for n in range(nb)], axis=0)
    t = jnp.dot(m2.astype(jnp.bfloat16), wb2_ref[...],
                preferred_element_type=jnp.float32) + b2_ref[...]

    # ---- residual add (f32), lane-dense store ----
    out_ref[...] = x + t.reshape(nb, H, WC)


def conv_residual_block(x_nchw, w1_hwio, b1, w2_hwio, b2, *, nb=None):
    """ConvResidualBlock.forward (defaults: no context, no BN, dropout p=0).

    x is NCHW (like the PyTorch module); conv weights are HWIO (3, 3, C, C).
    """
    N, C, H, W = x_nchw.shape
    WC = W * C

    # Batch elements per grid step: amortize the ~0.35us per-step overhead but
    # keep >=2 "parallel" steps so both v7x TensorCores get work.
    if nb is None:
        target = max(1, min(8, N // 2))
        nb = max(d for d in range(1, target + 1) if N % d == 0)
    assert N % nb == 0

    # Lane-dense activation layout: (N, H, W*C), channels fastest on lanes.
    x = jnp.transpose(x_nchw, (0, 2, 3, 1)).reshape(N, H, WC).astype(jnp.float32)

    # bf16 MXU operands; accumulation and residual stay f32.
    wb1 = _banded_conv_weight(w1_hwio.astype(jnp.float32), W).astype(jnp.bfloat16)
    wb2 = _banded_conv_weight(w2_hwio.astype(jnp.float32), W).astype(jnp.bfloat16)
    b1r = jnp.tile(b1.astype(jnp.float32), W).reshape(1, WC)
    b2r = jnp.tile(b2.astype(jnp.float32), W).reshape(1, WC)

    kernel = functools.partial(_conv_residual_kernel, nb, H, WC)
    out = pl.pallas_call(
        kernel,
        out_shape=jax.ShapeDtypeStruct((N, H, WC), jnp.float32),
        grid_spec=pltpu.PrefetchScalarGridSpec(
            num_scalar_prefetch=0,
            grid=(N // nb,),
            in_specs=[
                pl.BlockSpec((nb, H, WC), lambda i: (i, 0, 0)),
                # Grid-invariant operands; double-buffering them is negligible
                # at this size (pl.Buffered(1) would pin them for large C).
                pl.BlockSpec((3 * WC, WC), lambda i: (0, 0)),
                pl.BlockSpec((1, WC), lambda i: (0, 0)),
                pl.BlockSpec((3 * WC, WC), lambda i: (0, 0)),
                pl.BlockSpec((1, WC), lambda i: (0, 0)),
            ],
            out_specs=pl.BlockSpec((nb, H, WC), lambda i: (i, 0, 0)),
        ),
        # Working set is ~1 MiB here, well under the scoped-VMEM default; raise
        # vmem_limit_bytes only if nb / H tiles are grown.
        compiler_params=pltpu.CompilerParams(
            dimension_semantics=("parallel",)),
    )(x, wb1, b1r, wb2, b2r)

    return jnp.transpose(out.reshape(N, H, W, C), (0, 3, 1, 2))  # back to NCHW


def ref_forward(x_nchw, w1_hwio, b1, w2_hwio, b2):
    """Pure-JAX f32 reference of the PyTorch forward (default arguments)."""
    x = jnp.transpose(x_nchw, (0, 2, 3, 1))
    dn = ('NHWC', 'HWIO', 'NHWC')
    t = jax.nn.relu(x)
    t = lax.conv_general_dilated(t, w1_hwio, (1, 1), 'SAME',
                                 dimension_numbers=dn) + b1
    t = jax.nn.relu(t)
    t = lax.conv_general_dilated(t, w2_hwio, (1, 1), 'SAME',
                                 dimension_numbers=dn) + b2
    return jnp.transpose(x + t, (0, 3, 1, 2))


if __name__ == "__main__":
    key = jax.random.PRNGKey(0)
    k_x, k_w1, k_b1, k_w2, k_b2 = jax.random.split(key, 5)

    N, C, H, W = 2, 8, 16, 16          # W*C = 128 -> exactly lane-dense
    x = jax.random.normal(k_x, (N, C, H, W), jnp.float32)

    # conv_layers[0]: PyTorch default uniform(-1/sqrt(fan_in), 1/sqrt(fan_in))
    fan_in = C * 3 * 3
    bound = float(1.0 / np.sqrt(fan_in))
    w1 = jax.random.uniform(k_w1, (3, 3, C, C), jnp.float32, -bound, bound)
    b1 = jax.random.uniform(k_b1, (C,), jnp.float32, -bound, bound)
    # conv_layers[1]: zero_initialization=True -> uniform(-1e-3, 1e-3)
    w2 = jax.random.uniform(k_w2, (3, 3, C, C), jnp.float32, -1e-3, 1e-3)
    b2 = jax.random.uniform(k_b2, (C,), jnp.float32, -1e-3, 1e-3)

    out = conv_residual_block(x, w1, b1, w2, b2)
    out = jax.block_until_ready(out)

    ref = jax.block_until_ready(ref_forward(x, w1, b1, w2, b2))
    assert out.shape == (N, C, H, W)
    # bf16 MXU inputs (f32 accumulation + f32 residual) slightly loosen the
    # pure-f32 tolerance; observed error is well below 1e-3.
    np.testing.assert_allclose(np.asarray(out), np.asarray(ref),
                               atol=1e-3, rtol=1e-3)
    print("KERNEL_OK")
</pallas_src>

<mosaic_0001>
module attributes {stable_mosaic.version = 11 : i64} {
  func.func @_conv_residual_kernel(%arg0: i32, %arg1: memref<1x16x128xf32, #tpu.memory_space<vmem>>, %arg2: memref<384x128xbf16, #tpu.memory_space<vmem>>, %arg3: memref<1x128xf32, #tpu.memory_space<vmem>>, %arg4: memref<384x128xbf16, #tpu.memory_space<vmem>>, %arg5: memref<1x128xf32, #tpu.memory_space<vmem>>, %arg6: memref<1x16x128xf32, #tpu.memory_space<vmem>>) attributes {dimension_semantics = [#tpu.dimension_semantics<parallel>], iteration_bounds = array<i64: 2>, scalar_prefetch = 0 : i64, scratch_operands = 0 : i64, tpu.core_type = #tpu.core_type<tc>, window_params = [{transform_indices = @transform_0, window_bounds = array<i64: 1, 16, 128>}, {pipeline_mode = #tpu.pipeline_mode<synchronous>, transform_indices = @transform_1, window_bounds = array<i64: 384, 128>}, {pipeline_mode = #tpu.pipeline_mode<synchronous>, transform_indices = @transform_2, window_bounds = array<i64: 1, 128>}, {pipeline_mode = #tpu.pipeline_mode<synchronous>, transform_indices = @transform_3, window_bounds = array<i64: 384, 128>}, {pipeline_mode = #tpu.pipeline_mode<synchronous>, transform_indices = @transform_4, window_bounds = array<i64: 1, 128>}, {transform_indices = @transform_5, window_bounds = array<i64: 1, 16, 128>}]} {
    %c0 = arith.constant 0 : index
    %c0_0 = arith.constant 0 : index
    %c0_1 = arith.constant 0 : index
    %0 = vector.load %arg1[%c0, %c0_0, %c0_1] : memref<1x16x128xf32, #tpu.memory_space<vmem>>, vector<1x16x128xf32>
    %cst = arith.constant 0.000000e+00 : f32
    %1 = vector.broadcast %cst : f32 to vector<1x16x128xf32>
    %2 = arith.maximumf %0, %1 : vector<1x16x128xf32>
    %3 = vector.shape_cast %2 : vector<1x16x128xf32> to vector<16x128xf32>
    %cst_2 = arith.constant 0.000000e+00 : f32
    %4 = vector.broadcast %cst_2 : f32 to vector<1x128xf32>
    %5 = vector.extract_strided_slice %3 {offsets = [0, 0], sizes = [15, 128], strides = [1, 1]} : vector<16x128xf32> to vector<15x128xf32>
    %6 = tpu.concatenate %4, %5 in 0 : vector<1x128xf32>, vector<15x128xf32> -> vector<16x128xf32>
    %7 = vector.extract_strided_slice %3 {offsets = [1, 0], sizes = [15, 128], strides = [1, 1]} : vector<16x128xf32> to vector<15x128xf32>
    %8 = tpu.concatenate %7, %4 in 0 : vector<15x128xf32>, vector<1x128xf32> -> vector<16x128xf32>
    %9 = tpu.concatenate %6, %3, %8 in 1 : vector<16x128xf32>, vector<16x128xf32>, vector<16x128xf32> -> vector<16x384xf32>
    %10 = arith.truncf %9 : vector<16x384xf32> to vector<16x384xbf16>
    %c0_3 = arith.constant 0 : index
    %c0_4 = arith.constant 0 : index
    %11 = vector.load %arg2[%c0_3, %c0_4] : memref<384x128xbf16, #tpu.memory_space<vmem>>, vector<384x128xbf16>
    %cst_5 = arith.constant dense<0.000000e+00> : vector<16x128xf32>
    %12 = tpu.matmul %10, %11, %cst_5 {dimension_numbers = #tpu.dot_dimension_numbers<[1], [0], [0], [1], [0, 0, 1, 1], [], []>} : vector<16x384xbf16>, vector<384x128xbf16>, vector<16x128xf32> -> vector<16x128xf32>
    %c0_6 = arith.constant 0 : index
    %c0_7 = arith.constant 0 : index
    %13 = vector.load %arg3[%c0_6, %c0_7] : memref<1x128xf32, #tpu.memory_space<vmem>>, vector<1x128xf32>
    %14 = vector.broadcast %13 : vector<1x128xf32> to vector<16x128xf32>
    %15 = arith.addf %12, %14 : vector<16x128xf32>
    %cst_8 = arith.constant 0.000000e+00 : f32
    %16 = vector.broadcast %cst_8 : f32 to vector<16x128xf32>
    %17 = arith.maximumf %15, %16 : vector<16x128xf32>
    %cst_9 = arith.constant 0.000000e+00 : f32
    %18 = vector.broadcast %cst_9 : f32 to vector<1x128xf32>
    %19 = vector.extract_strided_slice %17 {offsets = [0, 0], sizes = [15, 128], strides = [1, 1]} : vector<16x128xf32> to vector<15x128xf32>
    %20 = tpu.concatenate %18, %19 in 0 : vector<1x128xf32>, vector<15x128xf32> -> vector<16x128xf32>
    %21 = vector.extract_strided_slice %17 {offsets = [1, 0], sizes = [15, 128], strides = [1, 1]} : vector<16x128xf32> to vector<15x128xf32>
    %22 = tpu.concatenate %21, %18 in 0 : vector<15x128xf32>, vector<1x128xf32> -> vector<16x128xf32>
    %23 = tpu.concatenate %20, %17, %22 in 1 : vector<16x128xf32>, vector<16x128xf32>, vector<16x128xf32> -> vector<16x384xf32>
    %24 = arith.truncf %23 : vector<16x384xf32> to vector<16x384xbf16>
    %c0_10 = arith.constant 0 : index
    %c0_11 = arith.constant 0 : index
    %25 = vector.load %arg4[%c0_10, %c0_11] : memref<384x128xbf16, #tpu.memory_space<vmem>>, vector<384x128xbf16>
    %cst_12 = arith.constant dense<0.000000e+00> : vector<16x128xf32>
    %26 = tpu.matmul %24, %25, %cst_12 {dimension_numbers = #tpu.dot_dimension_numbers<[1], [0], [0], [1], [0, 0, 1, 1], [], []>} : vector<16x384xbf16>, vector<384x128xbf16>, vector<16x128xf32> -> vector<16x128xf32>
    %c0_13 = arith.constant 0 : index
    %c0_14 = arith.constant 0 : index
    %27 = vector.load %arg5[%c0_13, %c0_14] : memref<1x128xf32, #tpu.memory_space<vmem>>, vector<1x128xf32>
    %28 = vector.broadcast %27 : vector<1x128xf32> to vector<16x128xf32>
    %29 = arith.addf %26, %28 : vector<16x128xf32>
    %30 = vector.shape_cast %29 : vector<16x128xf32> to vector<1x16x128xf32>
    %31 = arith.addf %0, %30 : vector<1x16x128xf32>
    %c0_15 = arith.constant 0 : index
    %c0_16 = arith.constant 0 : index
    %c0_17 = arith.constant 0 : index
    %32 = vector.load %arg6[%c0_15, %c0_16, %c0_17] : memref<1x16x128xf32, #tpu.memory_space<vmem>>, vector<1x16x128xf32>
    tpu.vector_store %arg6[%c0_15, %c0_16, %c0_17], %31 {strides = array<i32>} : memref<1x16x128xf32, #tpu.memory_space<vmem>>, vector<1x16x128xf32>,
    return
  }
  func.func @transform_0(%arg0: i32) -> (i32, i32, i32) {
    %c0_i32 = arith.constant 0 : i32
    %c0_i32_0 = arith.constant 0 : i32
    %c0_i32_1 = arith.constant 0 : i32
    return %arg0, %c0_i32, %c0_i32_0 : i32, i32, i32
  }
  func.func @transform_1(%arg0: i32) -> (i32, i32) {
    %c0_i32 = arith.constant 0 : i32
    %c0_i32_0 = arith.constant 0 : i32
    %c0_i32_1 = arith.constant 0 : i32
    return %c0_i32, %c0_i32_0 : i32, i32
  }
  func.func @transform_2(%arg0: i32) -> (i32, i32) {
    %c0_i32 = arith.constant 0 : i32
    %c0_i32_0 = arith.constant 0 : i32
    %c0_i32_1 = arith.constant 0 : i32
    return %c0_i32, %c0_i32_0 : i32, i32
  }
  func.func @transform_3(%arg0: i32) -> (i32, i32) {
    %c0_i32 = arith.constant 0 : i32
    %c0_i32_0 = arith.constant 0 : i32
    %c0_i32_1 = arith.constant 0 : i32
    return %c0_i32, %c0_i32_0 : i32, i32
  }
  func.func @transform_4(%arg0: i32) -> (i32, i32) {
    %c0_i32 = arith.constant 0 : i32
    %c0_i32_0 = arith.constant 0 : i32
    %c0_i32_1 = arith.constant 0 : i32
    return %c0_i32, %c0_i32_0 : i32, i32
  }
  func.func @transform_5(%arg0: i32) -> (i32, i32, i32) {
    %c0_i32 = arith.constant 0 : i32
    %c0_i32_0 = arith.constant 0 : i32
    %c0_i32_1 = arith.constant 0 : i32
    return %arg0, %c0_i32, %c0_i32_0 : i32, i32, i32
  }
}

</mosaic_0001>

<llo_original>
// kernel: tpu_custom_call.1
$region0: #{tpu_custom_call.1}
  #allocation0 [shape = 'u32[]', space=smem, size = 0x4, offset = 0x4, fixed_abs, tag = 'smem constant byte address 0x4 - core index']
  #allocation1 [shape = 'u32[144,128]{1,0:T(1,128)}', space=vmem, size = 0x12000, scoped, tag = 'internal scratch']
  %s0 = inlined_call_operand.hbm [shape: f32[2,16,128], index: 0, kind: input, shape index: {}]
  %s1 = inlined_call_operand.hbm [shape: bf16[384,128], index: 1, kind: input, shape index: {}]
  %s2 = inlined_call_operand.vmem [shape: f32[1,128], index: 2, kind: input, shape index: {}]
  %s3 = inlined_call_operand.hbm [shape: bf16[384,128], index: 3, kind: input, shape index: {}]
  %s4 = inlined_call_operand.vmem [shape: f32[1,128], index: 4, kind: input, shape index: {}]
  %s5 = inlined_call_operand.hbm [shape: f32[2,16,128], index: 5, kind: output, shape index: {}]
  %s6 = sld [smem:[#allocation0]]
  $region65: #{tpu_custom_call.1} parent=0
    _
  %s8 = ssub.s32 1, %s6
  %s9 = scalar_select 0, %s8, %s6
  $region1: #{tpu_custom_call.1} parent=0
    #allocation2 [shape = 'u8[16384]{0}', space=vmem, size = 0x4000, scoped, tag = 'input window, operand 0']
    #allocation3 [shape = 's32[2]{0}', space=sflag, size = 0x8, scoped, tag = 'scoped memory for tpu_custom_call.1']
    #allocation4 [shape = 's32[2]{0}', space=sflag, size = 0x8, scoped, tag = 'scoped memory for tpu_custom_call.1']
    #allocation5 [shape = 'u8[98304]{0}', space=vmem, size = 0x18000, scoped, tag = 'input window, operand 1, single buffered']
    #allocation6 [shape = 's32[1]{0}', space=sflag, size = 0x4, scoped, tag = 'scoped memory for tpu_custom_call.1']
    #allocation7 [shape = 'u8[98304]{0}', space=vmem, size = 0x18000, scoped, tag = 'input window, operand 3, single buffered']
    #allocation8 [shape = 'u8[16384]{0}', space=vmem, size = 0x4000, scoped, tag = 'output window, operand 0']
    %10 = vsyncpa [#allocation3], 0
    %s11 = scalar_lea.sflag [#allocation3], 1
    %12 = vsyncpa %s11, 0
    %13 = vsyncpa [#allocation6], 0
    %14 = vsyncpa [#allocation4], 0
    %s15 = scalar_lea.sflag [#allocation4], 1
    %16 = vsyncpa %s15, 0
    loop: start=0, step=1, limit=4
    $region2: #{tpu_custom_call.1} parent=1 // loop_pre_header
      _
    $region3: #{tpu_custom_call.1} parent=1 // loop_header
      %s18 = sphi 0, %s22
      %p19 = scmp.ge.s32.totalorder %s18, 4
      %s28 = sphi 0, %s30
      %s31 = sphi 0, %s28
      %s32 = sphi 0, %s31
      %s48 = sphi 0, %s32
      %s52 = sphi 0, %s52
      %s54 = sphi 0, %s52
      %s55 = sphi 0, %s54
      %s69 = sphi 0, %s55
      %s73 = sphi 0, %s73
      %s75 = sphi 0, %s73
      %s76 = sphi 0, %s75
      %s90 = sphi 0, %s76
      %s94 = sphi 0, %s94
      %s96 = sphi 0, %s94
      %s97 = sphi 0, %s96
      %s111 = sphi 0, %s97
      %s115 = sphi 0, %s115
      %s117 = sphi 0, %s115
      %s118 = sphi 0, %s117
      %s132 = sphi 0, %s118
      %s138 = sphi 0, %s140
      %s141 = sphi 0, %s138
      %s142 = sphi 0, %s141
      %s158 = sphi 0, %s142
    $region4: #{tpu_custom_call.1} parent=1 // loop_header_branch
      %21 = sbr.rel (%p19) target = $region8
    $region5: #{tpu_custom_call.1} parent=1 // loop_body
      %s23 = ssub.s32 %s18, 1
      %s24 = ssub.s32 %s18, 2
      %s25 = sadd.s32 %s18, 1
      %s26 = ssub.s32 %s18, %s25
      %p27 = scmp.eq.s32.totalorder %s26, 0
      %s29 = sadd.s32 %s28, 1
      %s30 = scalar_select %p27, %s28, %s29
      %p33 = pneg %p27
      %p34 = scmp.eq.s32.totalorder %s18, 1
      %p35 = por %p33, %p34
      %p36 = scmp.ne.s32.totalorder %s28, %s31
      %p37 = scmp.eq.s32.totalorder %s18, 0
      %p38 = por %p36, %p37
      %p39 = scmp.ne.s32.totalorder %s28, %s31
      %p40 = scmp.eq.s32.totalorder %s23, 1
      %p41 = por %p39, %p40
      %p42 = scmp.ne.s32.totalorder %s31, %s32
      %p43 = scmp.eq.s32.totalorder %s23, 0
      %p44 = por %p42, %p43
      %p45 = scmp.ne.s32.totalorder %s31, %s32
      %p46 = scmp.eq.s32.totalorder %s24, 1
      %p47 = por %p45, %p46
      %p49 = scmp.ne.s32.totalorder %s32, %s48
      %p50 = scmp.eq.s32.totalorder %s24, 0
      %p51 = por %p49, %p50
      %s53 = sadd.s32 %s52, 1
      %p56 = scmp.eq.s32.totalorder %s18, 1
      %p57 = scmp.ne.s32.totalorder %s52, %s54
      %p58 = scmp.eq.s32.totalorder %s18, 0
      %p59 = por %p57, %p58
      %p60 = scmp.ne.s32.totalorder %s52, %s54
      %p61 = scmp.eq.s32.totalorder %s23, 1
      %p62 = por %p60, %p61
      %p63 = scmp.ne.s32.totalorder %s54, %s55
      %p64 = scmp.eq.s32.totalorder %s23, 0
      %p65 = por %p63, %p64
      %p66 = scmp.ne.s32.totalorder %s54, %s55
      %p67 = scmp.eq.s32.totalorder %s24, 1
      %p68 = por %p66, %p67
      %p70 = scmp.ne.s32.totalorder %s55, %s69
      %p71 = scmp.eq.s32.totalorder %s24, 0
      %p72 = por %p70, %p71
      %s74 = sadd.s32 %s73, 1
      %p77 = scmp.eq.s32.totalorder %s18, 1
      %p78 = scmp.ne.s32.totalorder %s73, %s75
      %p79 = scmp.eq.s32.totalorder %s18, 0
      %p80 = por %p78, %p79
      %p81 = scmp.ne.s32.totalorder %s73, %s75
      %p82 = scmp.eq.s32.totalorder %s23, 1
      %p83 = por %p81, %p82
      %p84 = scmp.ne.s32.totalorder %s75, %s76
      %p85 = scmp.eq.s32.totalorder %s23, 0
      %p86 = por %p84, %p85
      %p87 = scmp.ne.s32.totalorder %s75, %s76
      %p88 = scmp.eq.s32.totalorder %s24, 1
      %p89 = por %p87, %p88
      %p91 = scmp.ne.s32.totalorder %s76, %s90
      %p92 = scmp.eq.s32.totalorder %s24, 0
      %p93 = por %p91, %p92
      %s95 = sadd.s32 %s94, 1
      %p98 = scmp.eq.s32.totalorder %s18, 1
      %p99 = scmp.ne.s32.totalorder %s94, %s96
      %p100 = scmp.eq.s32.totalorder %s18, 0
      %p101 = por %p99, %p100
      %p102 = scmp.ne.s32.totalorder %s94, %s96
      %p103 = scmp.eq.s32.totalorder %s23, 1
      %p104 = por %p102, %p103
      %p105 = scmp.ne.s32.totalorder %s96, %s97
      %p106 = scmp.eq.s32.totalorder %s23, 0
      %p107 = por %p105, %p106
      %p108 = scmp.ne.s32.totalorder %s96, %s97
      %p109 = scmp.eq.s32.totalorder %s24, 1
      %p110 = por %p108, %p109
      %p112 = scmp.ne.s32.totalorder %s97, %s111
      %p113 = scmp.eq.s32.totalorder %s24, 0
      %p114 = por %p112, %p113
      %s116 = sadd.s32 %s115, 1
      %p119 = scmp.eq.s32.totalorder %s18, 1
      %p120 = scmp.ne.s32.totalorder %s115, %s117
      %p121 = scmp.eq.s32.totalorder %s18, 0
      %p122 = por %p120, %p121
      %p123 = scmp.ne.s32.totalorder %s115, %s117
      %p124 = scmp.eq.s32.totalorder %s23, 1
      %p125 = por %p123, %p124
      %p126 = scmp.ne.s32.totalorder %s117, %s118
      %p127 = scmp.eq.s32.totalorder %s23, 0
      %p128 = por %p126, %p127
      %p129 = scmp.ne.s32.totalorder %s117, %s118
      %p130 = scmp.eq.s32.totalorder %s24, 1
      %p131 = por %p129, %p130
      %p133 = scmp.ne.s32.totalorder %s118, %s132
      %p134 = scmp.eq.s32.totalorder %s24, 0
      %p135 = por %p133, %p134
      %s136 = ssub.s32 %s18, %s25
      %p137 = scmp.eq.s32.totalorder %s136, 0
      %s139 = sadd.s32 %s138, 1
      %s140 = scalar_select %p137, %s138, %s139
      %p143 = pneg %p137
      %p144 = scmp.eq.s32.totalorder %s18, 1
      %p145 = por %p143, %p144
      %p146 = scmp.ne.s32.totalorder %s138, %s141
      %p147 = scmp.eq.s32.totalorder %s18, 0
      %p148 = por %p146, %p147
      %p149 = scmp.ne.s32.totalorder %s138, %s141
      %p150 = scmp.eq.s32.totalorder %s23, 1
      %p151 = por %p149, %p150
      %p152 = scmp.ne.s32.totalorder %s141, %s142
      %p153 = scmp.eq.s32.totalorder %s23, 0
      %p154 = por %p152, %p153
      %p155 = scmp.ne.s32.totalorder %s141, %s142
      %p156 = scmp.eq.s32.totalorder %s24, 1
      %p157 = por %p155, %p156
      %p159 = scmp.ne.s32.totalorder %s142, %s158
      %p160 = scmp.eq.s32.totalorder %s24, 0
      %p161 = por %p159, %p160
      %p162 = scmp.le.s32.totalorder 1, %s18
      %p163 = scmp.lt.s32.totalorder %s18, 3
      %p164 = pnand %p162, %p163
      %p165 = pneg %p164
      // Predicated region
      $region9: #{tpu_custom_call.1} parent=5 // pred_check
        _
      $region10: #{tpu_custom_call.1} parent=5 // pred_check_branch
        %167 = sbr.rel (%p164) target = $region12
      $region11: #{tpu_custom_call.1} parent=5 // pred_region
        %s168 = ssub.s32 %s18, 1
        // Predicated region
        $region13: #{tpu_custom_call.1} parent=11 // pred_check
          %p169 = pneg %p65
        $region14: #{tpu_custom_call.1} parent=11 // pred_check_branch
          %171 = sbr.rel (%p169) target = $region16
        $region15: #{tpu_custom_call.1} parent=11 // pred_region
          %s173 = ssub.s32 3072, 3072
          %174 = vsyncadd [#allocation6], %s173
          %s175 = sshll.u32 [#allocation5], 4
          %s176 = int_to_ptr.vmem [resolvable:$true] %s175
          %181 = dma.hbm_to_vmem [thread:$0]  %s1, 3072, %s176, [#allocation6], 64, 64, 4
        $region16: #{tpu_custom_call.1} parent=11 // pred_fallthru
          _
        // Predicated region
        $region17: #{tpu_custom_call.1} parent=11 // pred_check
          %p182 = pneg %p86
        $region18: #{tpu_custom_call.1} parent=11 // pred_check_branch
          %184 = sbr.rel (%p182) target = $region20
        $region19: #{tpu_custom_call.1} parent=11 // pred_region
          _
        $region20: #{tpu_custom_call.1} parent=11 // pred_fallthru
          _
        // Predicated region
        $region21: #{tpu_custom_call.1} parent=11 // pred_check
          %p185 = pneg %p107
        $region22: #{tpu_custom_call.1} parent=11 // pred_check_branch
          %187 = sbr.rel (%p185) target = $region24
        $region23: #{tpu_custom_call.1} parent=11 // pred_region
          %s189 = ssub.s32 3072, 3072
          %190 = vsyncadd [#allocation6], %s189
          %s191 = sshll.u32 [#allocation7], 4
          %s192 = int_to_ptr.vmem [resolvable:$true] %s191
          %197 = dma.hbm_to_vmem [thread:$0]  %s3, 3072, %s192, [#allocation6], 64, 64, 4
        $region24: #{tpu_custom_call.1} parent=11 // pred_fallthru
          _
        // Predicated region
        $region25: #{tpu_custom_call.1} parent=11 // pred_check
          %p198 = pneg %p128
        $region26: #{tpu_custom_call.1} parent=11 // pred_check_branch
          %200 = sbr.rel (%p198) target = $region28
        $region27: #{tpu_custom_call.1} parent=11 // pred_region
          _
        $region28: #{tpu_custom_call.1} parent=11 // pred_fallthru
          _
      $region12: #{tpu_custom_call.1} parent=5 // pred_fallthru
        _
      %p201 = scmp.lt.s32.totalorder %s18, 2
      // Predicated region
      $region29: #{tpu_custom_call.1} parent=5 // pred_check
        %p202 = pneg %p201
      $region30: #{tpu_custom_call.1} parent=5 // pred_check_branch
        %204 = sbr.rel (%p202) target = $region32
      $region31: #{tpu_custom_call.1} parent=5 // pred_region
        // Predicated region
        $region33: #{tpu_custom_call.1} parent=31 // pred_check
          %p205 = pneg %p38
        $region34: #{tpu_custom_call.1} parent=31 // pred_check_branch
          %207 = sbr.rel (%p205) target = $region36
        $region35: #{tpu_custom_call.1} parent=31 // pred_region
          %s208 = sand.u32 %s28, 1
          %s209 = scalar_lea.sflag [#allocation3], %s208
          %s210 = sand.u32 %s28, 1
          %s211 = smul.addr %s210, 16
          %s212 = scalar_lea.vmem [#allocation2], %s211
          %s214 = ssub.s32 256, 256
          %215 = vsyncadd %s209, %s214
          %s216 = smul.addr %s18, 2
          %s217 = smul.addr %s216, 128
          %s218 = scalar_lea.hbm %s0, %s217
          %s219 = sshll.u32 %s212, 4
          %s220 = int_to_ptr.vmem [resolvable:$true] %s219
          %225 = dma.hbm_to_vmem [thread:$0]  %s218, 256, %s220, %s209, 128, 128, 8
        $region36: #{tpu_custom_call.1} parent=31 // pred_fallthru
          _
      $region32: #{tpu_custom_call.1} parent=5 // pred_fallthru
        _
      %p226 = scmp.le.s32.totalorder 1, %s18
      %p227 = scmp.lt.s32.totalorder %s18, 3
      %p228 = pnand %p226, %p227
      %p229 = pneg %p228
      // Predicated region
      $region37: #{tpu_custom_call.1} parent=5 // pred_check
        _
      $region38: #{tpu_custom_call.1} parent=5 // pred_check_branch
        %231 = sbr.rel (%p228) target = $region40
      $region39: #{tpu_custom_call.1} parent=5 // pred_region
        %s232 = ssub.s32 %s18, 1
        %s233 = sand.u32 %s31, 1
        %s234 = scalar_lea.sflag [#allocation3], %s233
        %s235 = sand.u32 %s31, 1
        %s236 = smul.addr %s235, 16
        %s237 = scalar_lea.vmem [#allocation2], %s236
        // Predicated region
        $region41: #{tpu_custom_call.1} parent=39 // pred_check
          %p238 = pneg %p44
        $region42: #{tpu_custom_call.1} parent=39 // pred_check_branch
          %240 = sbr.rel (%p238) target = $region44
        $region43: #{tpu_custom_call.1} parent=39 // pred_region
          %241 = dma.done %s234, 256
        $region44: #{tpu_custom_call.1} parent=39 // pred_fallthru
          _
        // Predicated region
        $region45: #{tpu_custom_call.1} parent=39 // pred_check
          %p242 = pneg %p65
        $region46: #{tpu_custom_call.1} parent=39 // pred_check_branch
          %244 = sbr.rel (%p242) target = $region48
        $region47: #{tpu_custom_call.1} parent=39 // pred_region
          %245 = dma.done [#allocation6], 3072
        $region48: #{tpu_custom_call.1} parent=39 // pred_fallthru
          _
        // Predicated region
        $region49: #{tpu_custom_call.1} parent=39 // pred_check
          %p246 = pneg %p107
        $region50: #{tpu_custom_call.1} parent=39 // pred_check_branch
          %248 = sbr.rel (%p246) target = $region52
        $region51: #{tpu_custom_call.1} parent=39 // pred_region
          %249 = dma.done [#allocation6], 3072
        $region52: #{tpu_custom_call.1} parent=39 // pred_fallthru
          _
        %s250 = sand.u32 %s31, 1
        %s251 = scalar_lea.sflag [#allocation3], %s250
        %s252 = sand.u32 %s31, 1
        %s253 = smul.addr %s252, 16
        %s254 = scalar_lea.vmem [#allocation2], %s253
        %p255 = pneg %p44
        %p256 = pneg %p41
        %p257 = pneg %p65
        %p258 = pneg %p62
        %p259 = pneg %p86
        %p260 = pneg %p83
        %p261 = pneg %p107
        %p262 = pneg %p104
        %p263 = pneg %p128
        %p264 = pneg %p125
        %p265 = pneg %p154
        %p266 = pneg %p151
        %s267 = sand.u32 %s141, 1
        %s268 = scalar_lea.sflag [#allocation4], %s267
        %s269 = sand.u32 %s141, 1
        %s270 = smul.addr %s269, 16
        %s271 = scalar_lea.vmem [#allocation8], %s270
        %v273 = vld [vmem:[%s237] sm:$0xff]
        %v274 = vld [vmem:[%s237 + $0x8] sm:$0xff]
        %v275 = vmax.f32 %v273, 0.0
        %v276 = vmax.f32 %v274, 0.0
        %vm279 = vcmask 1040384
        %v280 = vrot.slane %v275, 7
        %v281 = vrot.slane %v276, 7
        %v282 = vsel %vm279, %v280, %v281
        %v285 = vsel %vm279, 0.0, %v280
        %vm286 = vcmask 1046528
        %v287 = vrot.slane %v275, 1
        %v288 = vrot.slane %v276, 1
        %v289 = vsel %vm286, %v287, %v288
        %v292 = vsel %vm286, %v288, 0.0
        %v293 = vpack.c.bf16 %v282, %v285
        %v294 = vpack.c.bf16 %v276, %v275
        %v295 = vpack.c.bf16 %v292, %v289
        %v296 = vld [vmem:[#allocation5] sm:$0xf]
        %v297 = vld [vmem:[#allocation5 + $0x4] sm:$0xf]
        %v298 = vld [vmem:[#allocation5 + $0x8] sm:$0xf]
        %v299 = vld [vmem:[#allocation5 + $0xc] sm:$0xf]
        %v300 = vld [vmem:[#allocation5 + $0x10] sm:$0xf]
        %v301 = vld [vmem:[#allocation5 + $0x14] sm:$0xf]
        %v302 = vld [vmem:[#allocation5 + $0x18] sm:$0xf]
        %v303 = vld [vmem:[#allocation5 + $0x1c] sm:$0xf]
        %v304 = vld [vmem:[#allocation5 + $0x20] sm:$0xf]
        %v305 = vld [vmem:[#allocation5 + $0x24] sm:$0xf]
        %v306 = vld [vmem:[#allocation5 + $0x28] sm:$0xf]
        %v307 = vld [vmem:[#allocation5 + $0x2c] sm:$0xf]
        %v308 = vld [vmem:[#allocation5 + $0x30] sm:$0xf]
        %v309 = vld [vmem:[#allocation5 + $0x34] sm:$0xf]
        %v310 = vld [vmem:[#allocation5 + $0x38] sm:$0xf]
        %v311 = vld [vmem:[#allocation5 + $0x3c] sm:$0xf]
        %v312 = vld [vmem:[#allocation5 + $0x40] sm:$0xf]
        %v313 = vld [vmem:[#allocation5 + $0x44] sm:$0xf]
        %v314 = vld [vmem:[#allocation5 + $0x48] sm:$0xf]
        %v315 = vld [vmem:[#allocation5 + $0x4c] sm:$0xf]
        %v316 = vld [vmem:[#allocation5 + $0x50] sm:$0xf]
        %v317 = vld [vmem:[#allocation5 + $0x54] sm:$0xf]
        %v318 = vld [vmem:[#allocation5 + $0x58] sm:$0xf]
        %v319 = vld [vmem:[#allocation5 + $0x5c] sm:$0xf]
        %v320 = vld [vmem:[#allocation5 + $0x60] sm:$0xf]
        %v321 = vld [vmem:[#allocation5 + $0x64] sm:$0xf]
        %v322 = vld [vmem:[#allocation5 + $0x68] sm:$0xf]
        %v323 = vld [vmem:[#allocation5 + $0x6c] sm:$0xf]
        %v324 = vld [vmem:[#allocation5 + $0x70] sm:$0xf]
        %v325 = vld [vmem:[#allocation5 + $0x74] sm:$0xf]
        %v326 = vld [vmem:[#allocation5 + $0x78] sm:$0xf]
        %v327 = vld [vmem:[#allocation5 + $0x7c] sm:$0xf]
        %v328 = vld [vmem:[#allocation5 + $0x80] sm:$0xf]
        %v329 = vld [vmem:[#allocation5 + $0x84] sm:$0xf]
        %v330 = vld [vmem:[#allocation5 + $0x88] sm:$0xf]
        %v331 = vld [vmem:[#allocation5 + $0x8c] sm:$0xf]
        %v332 = vld [vmem:[#allocation5 + $0x90] sm:$0xf]
        %v333 = vld [vmem:[#allocation5 + $0x94] sm:$0xf]
        %v334 = vld [vmem:[#allocation5 + $0x98] sm:$0xf]
        %v335 = vld [vmem:[#allocation5 + $0x9c] sm:$0xf]
        %v336 = vld [vmem:[#allocation5 + $0xa0] sm:$0xf]
        %v337 = vld [vmem:[#allocation5 + $0xa4] sm:$0xf]
        %v338 = vld [vmem:[#allocation5 + $0xa8] sm:$0xf]
        %v339 = vld [vmem:[#allocation5 + $0xac] sm:$0xf]
        %v340 = vld [vmem:[#allocation5 + $0xb0] sm:$0xf]
        %v341 = vld [vmem:[#allocation5 + $0xb4] sm:$0xf]
        %v342 = vld [vmem:[#allocation5 + $0xb8] sm:$0xf]
        %v343 = vld [vmem:[#allocation5 + $0xbc] sm:$0xf]
        %v344 = vld [vmem:[%s2] sm:$0x1]
        %v346 = vlaneseq
        %v347 = vshrl.u32 %v346, 7
        %v348 = vsub.s32 0, %v347
        %v349 = vrot.slane %v344, %v348
        %v399 = vunpack.c.l.b16 %v296
        %v400 = vunpack.c.l.b16 %v297
        %v401 = vunpack.c.l.b16 %v298
        %v402 = vunpack.c.l.b16 %v299
        %v403 = vunpack.c.l.b16 %v300
        %v404 = vunpack.c.l.b16 %v301
        %v405 = vunpack.c.l.b16 %v302
        %v406 = vunpack.c.l.b16 %v303
        %v407 = vunpack.c.l.b16 %v304
        %v408 = vunpack.c.l.b16 %v305
        %v409 = vunpack.c.l.b16 %v306
        %v410 = vunpack.c.l.b16 %v307
        %v411 = vunpack.c.l.b16 %v308
        %v412 = vunpack.c.l.b16 %v309
        %v413 = vunpack.c.l.b16 %v310
        %v414 = vunpack.c.l.b16 %v311
        %v415 = vunpack.c.l.b16 %v312
        %v416 = vunpack.c.l.b16 %v313
        %v417 = vunpack.c.l.b16 %v314
        %v418 = vunpack.c.l.b16 %v315
        %v419 = vunpack.c.l.b16 %v316
        %v420 = vunpack.c.l.b16 %v317
        %v421 = vunpack.c.l.b16 %v318
        %v422 = vunpack.c.l.b16 %v319
        %v423 = vunpack.c.l.b16 %v320
        %v424 = vunpack.c.l.b16 %v321
        %v425 = vunpack.c.l.b16 %v322
        %v426 = vunpack.c.l.b16 %v323
        %v427 = vunpack.c.l.b16 %v324
        %v428 = vunpack.c.l.b16 %v325
        %v429 = vunpack.c.l.b16 %v326
        %v430 = vunpack.c.l.b16 %v327
        %v431 = vunpack.c.l.b16 %v328
        %v432 = vunpack.c.l.b16 %v329
        %v433 = vunpack.c.l.b16 %v330
        %v434 = vunpack.c.l.b16 %v331
        %v435 = vunpack.c.l.b16 %v332
        %v436 = vunpack.c.l.b16 %v333
        %v437 = vunpack.c.l.b16 %v334
        %v438 = vunpack.c.l.b16 %v335
        %v439 = vunpack.c.l.b16 %v336
        %v440 = vunpack.c.l.b16 %v337
        %v441 = vunpack.c.l.b16 %v338
        %v442 = vunpack.c.l.b16 %v339
        %v443 = vunpack.c.l.b16 %v340
        %v444 = vunpack.c.l.b16 %v341
        %v445 = vunpack.c.l.b16 %v342
        %v446 = vunpack.c.l.b16 %v343
        %v447 = vpack.c.b16 %v400, %v399
        %v448 = vpack.c.b16 %v402, %v401
        %v449 = vpack.c.b16 %v404, %v403
        %v450 = vpack.c.b16 %v406, %v405
        %v451 = vpack.c.b16 %v408, %v407
        %v452 = vpack.c.b16 %v410, %v409
        %v453 = vpack.c.b16 %v412, %v411
        %v454 = vpack.c.b16 %v414, %v413
        %v455 = vpack.c.b16 %v416, %v415
        %v456 = vpack.c.b16 %v418, %v417
        %v457 = vpack.c.b16 %v420, %v419
        %v458 = vpack.c.b16 %v422, %v421
        %v459 = vpack.c.b16 %v424, %v423
        %v460 = vpack.c.b16 %v426, %v425
        %v461 = vpack.c.b16 %v428, %v427
        %v462 = vpack.c.b16 %v430, %v429
        %v463 = vpack.c.b16 %v432, %v431
        %v464 = vpack.c.b16 %v434, %v433
        %v465 = vpack.c.b16 %v436, %v435
        %v466 = vpack.c.b16 %v438, %v437
        %v467 = vpack.c.b16 %v440, %v439
        %v468 = vpack.c.b16 %v442, %v441
        %v469 = vpack.c.b16 %v444, %v443
        %v470 = vpack.c.b16 %v446, %v445
        %495 = vmatprep.subr.bf16.mxu0 0
        %496 = vmatpush1.bf16.msra.mxu0 %v447
        %497 = vmatprep.subr.bf16.mxu0 0
        %498 = vmatpush1.bf16.msra.mxu0 %v448
        %499 = vmatprep.subr.bf16.mxu0 0
        %500 = vmatpush1.bf16.msra.mxu0 %v449
        %501 = vmatprep.subr.bf16.mxu0 0
        %502 = vmatpush1.bf16.msra.mxu0 %v450
        %503 = vmatprep.subr.bf16.mxu0 0
        %504 = vmatpush1.bf16.msra.mxu0 %v451
        %505 = vmatprep.subr.bf16.mxu0 0
        %506 = vmatpush1.bf16.msra.mxu0 %v452
        %507 = vmatprep.subr.bf16.mxu0 0
        %508 = vmatpush1.bf16.msra.mxu0 %v453
        %509 = vmatprep.subr.bf16.mxu0 0
        %510 = vmatpush1.bf16.msra.mxu0 %v454
        %511 = vmatprep.subr.bf16.mxu0 0
        %512 = vmatpush1.bf16.msra.mxu0 %v455
        %513 = vmatprep.subr.bf16.mxu0 0
        %514 = vmatpush1.bf16.msra.mxu0 %v456
        %515 = vmatprep.subr.bf16.mxu0 0
        %516 = vmatpush1.bf16.msra.mxu0 %v457
        %517 = vmatprep.subr.bf16.mxu0 0
        %518 = vmatpush1.bf16.msra.mxu0 %v458
        %519 = vmatprep.subr.bf16.mxu0 0
        %520 = vmatpush1.bf16.msra.mxu0 %v459
        %521 = vmatprep.subr.bf16.mxu0 0
        %522 = vmatpush1.bf16.msra.mxu0 %v460
        %523 = vmatprep.subr.bf16.mxu0 0
        %524 = vmatpush1.bf16.msra.mxu0 %v461
        %525 = vmatprep.subr.bf16.mxu0 0
        %526 = vmatpush1.bf16.msra.mxu0 %v462
        %527 = vmatprep.mubr.bf16.mxu0 %v294
        %528 = vmatmul.mubr.bf16.gmra.mrb[0].mxu0 %v293
        %v529 = vpop.f32.mrb[0].mxu0
        %v530 = vadd.f32 %v349, %v529
        %v531 = vpop.f32.mrb[0].mxu0
        %v532 = vpop.f32.mrb[0].mxu0
        %v533 = vadd.f32 %v349, %v532
        %v534 = vpop.f32.mrb[0].mxu0
        %535 = vdwg.mxu0
        %536 = vmatprep.subr.bf16.mxu0 0
        %537 = vmatpush1.bf16.msra.mxu0 %v463
        %538 = vmatprep.subr.bf16.mxu0 0
        %539 = vmatpush1.bf16.msra.mxu0 %v464
        %540 = vmatprep.subr.bf16.mxu0 0
        %541 = vmatpush1.bf16.msra.mxu0 %v465
        %542 = vmatprep.subr.bf16.mxu0 0
        %543 = vmatpush1.bf16.msra.mxu0 %v466
        %544 = vmatprep.subr.bf16.mxu0 0
        %545 = vmatpush1.bf16.msra.mxu0 %v467
        %546 = vmatprep.subr.bf16.mxu0 0
        %547 = vmatpush1.bf16.msra.mxu0 %v468
        %548 = vmatprep.subr.bf16.mxu0 0
        %549 = vmatpush1.bf16.msra.mxu0 %v469
        %550 = vmatprep.subr.bf16.mxu0 0
        %551 = vmatpush1.bf16.msra.mxu0 %v470
        %552 = vmatprep.subr.bf16.mxu0 0
        %553 = vmatpush1.bf16.msra.mxu0 0
        %554 = vmatprep.subr.bf16.mxu0 0
        %555 = vmatpush1.bf16.msra.mxu0 0
        %556 = vmatprep.subr.bf16.mxu0 0
        %557 = vmatpush1.bf16.msra.mxu0 0
        %558 = vmatprep.subr.bf16.mxu0 0
        %559 = vmatpush1.bf16.msra.mxu0 0
        %560 = vmatprep.subr.bf16.mxu0 0
        %561 = vmatpush1.bf16.msra.mxu0 0
        %562 = vmatprep.subr.bf16.mxu0 0
        %563 = vmatpush1.bf16.msra.mxu0 0
        %564 = vmatprep.subr.bf16.mxu0 0
        %565 = vmatpush1.bf16.msra.mxu0 0
        %566 = vmatprep.subr.bf16.mxu0 0
        %567 = vmatpush1.bf16.msra.mxu0 0
        %568 = vmatprep.mubr.bf16.mxu0 0
        %569 = vmatmul.mubr.bf16.gmra.mrb[0].mxu0 %v295
        %v570 = vpop.f32.mrb[0].mxu0
        %v571 = vadd.f32 %v530, %v570
        %v572 = vpop.f32.mrb[0].mxu0
        %v573 = vpop.f32.mrb[0].mxu0
        %v574 = vadd.f32 %v533, %v573
        %v575 = vpop.f32.mrb[0].mxu0
        %576 = vdwg.mxu0
        %v577 = vmax.f32 %v571, 0.0
        %v578 = vmax.f32 %v574, 0.0
        %v581 = vrot.slane %v577, 7
        %v582 = vrot.slane %v578, 7
        %v583 = vsel %vm279, %v581, %v582
        %v586 = vsel %vm279, 0.0, %v581
        %v587 = vrot.slane %v577, 1
        %v588 = vrot.slane %v578, 1
        %v589 = vsel %vm286, %v587, %v588
        %v592 = vsel %vm286, %v588, 0.0
        %v593 = vpack.c.bf16 %v583, %v586
        %v594 = vpack.c.bf16 %v578, %v577
        %v595 = vpack.c.bf16 %v592, %v589
        %v596 = vld [vmem:[#allocation7] sm:$0xf]
        %v597 = vld [vmem:[#allocation7 + $0x4] sm:$0xf]
        %v598 = vld [vmem:[#allocation7 + $0x8] sm:$0xf]
        %v599 = vld [vmem:[#allocation7 + $0xc] sm:$0xf]
        %v600 = vld [vmem:[#allocation7 + $0x10] sm:$0xf]
        %v601 = vld [vmem:[#allocation7 + $0x14] sm:$0xf]
        %v602 = vld [vmem:[#allocation7 + $0x18] sm:$0xf]
        %v603 = vld [vmem:[#allocation7 + $0x1c] sm:$0xf]
        %v604 = vld [vmem:[#allocation7 + $0x20] sm:$0xf]
        %v605 = vld [vmem:[#allocation7 + $0x24] sm:$0xf]
        %v606 = vld [vmem:[#allocation7 + $0x28] sm:$0xf]
        %v607 = vld [vmem:[#allocation7 + $0x2c] sm:$0xf]
        %v608 = vld [vmem:[#allocation7 + $0x30] sm:$0xf]
        %v609 = vld [vmem:[#allocation7 + $0x34] sm:$0xf]
        %v610 = vld [vmem:[#allocation7 + $0x38] sm:$0xf]
        %v611 = vld [vmem:[#allocation7 + $0x3c] sm:$0xf]
        %v612 = vld [vmem:[#allocation7 + $0x40] sm:$0xf]
        %v613 = vld [vmem:[#allocation7 + $0x44] sm:$0xf]
        %v614 = vld [vmem:[#allocation7 + $0x48] sm:$0xf]
        %v615 = vld [vmem:[#allocation7 + $0x4c] sm:$0xf]
        %v616 = vld [vmem:[#allocation7 + $0x50] sm:$0xf]
        %v617 = vld [vmem:[#allocation7 + $0x54] sm:$0xf]
        %v618 = vld [vmem:[#allocation7 + $0x58] sm:$0xf]
        %v619 = vld [vmem:[#allocation7 + $0x5c] sm:$0xf]
        %v620 = vld [vmem:[#allocation7 + $0x60] sm:$0xf]
        %v621 = vld [vmem:[#allocation7 + $0x64] sm:$0xf]
        %v622 = vld [vmem:[#allocation7 + $0x68] sm:$0xf]
        %v623 = vld [vmem:[#allocation7 + $0x6c] sm:$0xf]
        %v624 = vld [vmem:[#allocation7 + $0x70] sm:$0xf]
        %v625 = vld [vmem:[#allocation7 + $0x74] sm:$0xf]
        %v626 = vld [vmem:[#allocation7 + $0x78] sm:$0xf]
        %v627 = vld [vmem:[#allocation7 + $0x7c] sm:$0xf]
        %v628 = vld [vmem:[#allocation7 + $0x80] sm:$0xf]
        %v629 = vld [vmem:[#allocation7 + $0x84] sm:$0xf]
        %v630 = vld [vmem:[#allocation7 + $0x88] sm:$0xf]
        %v631 = vld [vmem:[#allocation7 + $0x8c] sm:$0xf]
        %v632 = vld [vmem:[#allocation7 + $0x90] sm:$0xf]
        %v633 = vld [vmem:[#allocation7 + $0x94] sm:$0xf]
        %v634 = vld [vmem:[#allocation7 + $0x98] sm:$0xf]
        %v635 = vld [vmem:[#allocation7 + $0x9c] sm:$0xf]
        %v636 = vld [vmem:[#allocation7 + $0xa0] sm:$0xf]
        %v637 = vld [vmem:[#allocation7 + $0xa4] sm:$0xf]
        %v638 = vld [vmem:[#allocation7 + $0xa8] sm:$0xf]
        %v639 = vld [vmem:[#allocation7 + $0xac] sm:$0xf]
        %v640 = vld [vmem:[#allocation7 + $0xb0] sm:$0xf]
        %v641 = vld [vmem:[#allocation7 + $0xb4] sm:$0xf]
        %v642 = vld [vmem:[#allocation7 + $0xb8] sm:$0xf]
        %v643 = vld [vmem:[#allocation7 + $0xbc] sm:$0xf]
        %v644 = vld [vmem:[%s4] sm:$0x1]
        %v646 = vlaneseq
        %v647 = vshrl.u32 %v646, 7
        %v648 = vsub.s32 0, %v647
        %v649 = vrot.slane %v644, %v648
        %v699 = vunpack.c.l.b16 %v596
        %v700 = vunpack.c.l.b16 %v597
        %v701 = vunpack.c.l.b16 %v598
        %v702 = vunpack.c.l.b16 %v599
        %v703 = vunpack.c.l.b16 %v600
        %v704 = vunpack.c.l.b16 %v601
        %v705 = vunpack.c.l.b16 %v602
        %v706 = vunpack.c.l.b16 %v603
        %v707 = vunpack.c.l.b16 %v604
        %v708 = vunpack.c.l.b16 %v605
        %v709 = vunpack.c.l.b16 %v606
        %v710 = vunpack.c.l.b16 %v607
        %v711 = vunpack.c.l.b16 %v608
        %v712 = vunpack.c.l.b16 %v609
        %v713 = vunpack.c.l.b16 %v610
        %v714 = vunpack.c.l.b16 %v611
        %v715 = vunpack.c.l.b16 %v612
        %v716 = vunpack.c.l.b16 %v613
        %v717 = vunpack.c.l.b16 %v614
        %v718 = vunpack.c.l.b16 %v615
        %v719 = vunpack.c.l.b16 %v616
        %v720 = vunpack.c.l.b16 %v617
        %v721 = vunpack.c.l.b16 %v618
        %v722 = vunpack.c.l.b16 %v619
        %v723 = vunpack.c.l.b16 %v620
        %v724 = vunpack.c.l.b16 %v621
        %v725 = vunpack.c.l.b16 %v622
        %v726 = vunpack.c.l.b16 %v623
        %v727 = vunpack.c.l.b16 %v624
        %v728 = vunpack.c.l.b16 %v625
        %v729 = vunpack.c.l.b16 %v626
        %v730 = vunpack.c.l.b16 %v627
        %v731 = vunpack.c.l.b16 %v628
        %v732 = vunpack.c.l.b16 %v629
        %v733 = vunpack.c.l.b16 %v630
        %v734 = vunpack.c.l.b16 %v631
        %v735 = vunpack.c.l.b16 %v632
        %v736 = vunpack.c.l.b16 %v633
        %v737 = vunpack.c.l.b16 %v634
        %v738 = vunpack.c.l.b16 %v635
        %v739 = vunpack.c.l.b16 %v636
        %v740 = vunpack.c.l.b16 %v637
        %v741 = vunpack.c.l.b16 %v638
        %v742 = vunpack.c.l.b16 %v639
        %v743 = vunpack.c.l.b16 %v640
        %v744 = vunpack.c.l.b16 %v641
        %v745 = vunpack.c.l.b16 %v642
        %v746 = vunpack.c.l.b16 %v643
        %v747 = vpack.c.b16 %v700, %v699
        %v748 = vpack.c.b16 %v702, %v701
        %v749 = vpack.c.b16 %v704, %v703
        %v750 = vpack.c.b16 %v706, %v705
        %v751 = vpack.c.b16 %v708, %v707
        %v752 = vpack.c.b16 %v710, %v709
        %v753 = vpack.c.b16 %v712, %v711
        %v754 = vpack.c.b16 %v714, %v713
        %v755 = vpack.c.b16 %v716, %v715
        %v756 = vpack.c.b16 %v718, %v717
        %v757 = vpack.c.b16 %v720, %v719
        %v758 = vpack.c.b16 %v722, %v721
        %v759 = vpack.c.b16 %v724, %v723
        %v760 = vpack.c.b16 %v726, %v725
        %v761 = vpack.c.b16 %v728, %v727
        %v762 = vpack.c.b16 %v730, %v729
        %v763 = vpack.c.b16 %v732, %v731
        %v764 = vpack.c.b16 %v734, %v733
        %v765 = vpack.c.b16 %v736, %v735
        %v766 = vpack.c.b16 %v738, %v737
        %v767 = vpack.c.b16 %v740, %v739
        %v768 = vpack.c.b16 %v742, %v741
        %v769 = vpack.c.b16 %v744, %v743
        %v770 = vpack.c.b16 %v746, %v745
        %795 = vmatprep.subr.bf16.mxu0 0
        %796 = vmatpush1.bf16.msra.mxu0 %v747
        %797 = vmatprep.subr.bf16.mxu0 0
        %798 = vmatpush1.bf16.msra.mxu0 %v748
        %799 = vmatprep.subr.bf16.mxu0 0
        %800 = vmatpush1.bf16.msra.mxu0 %v749
        %801 = vmatprep.subr.bf16.mxu0 0
        %802 = vmatpush1.bf16.msra.mxu0 %v750
        %803 = vmatprep.subr.bf16.mxu0 0
        %804 = vmatpush1.bf16.msra.mxu0 %v751
        %805 = vmatprep.subr.bf16.mxu0 0
        %806 = vmatpush1.bf16.msra.mxu0 %v752
        %807 = vmatprep.subr.bf16.mxu0 0
        %808 = vmatpush1.bf16.msra.mxu0 %v753
        %809 = vmatprep.subr.bf16.mxu0 0
        %810 = vmatpush1.bf16.msra.mxu0 %v754
        %811 = vmatprep.subr.bf16.mxu0 0
        %812 = vmatpush1.bf16.msra.mxu0 %v755
        %813 = vmatprep.subr.bf16.mxu0 0
        %814 = vmatpush1.bf16.msra.mxu0 %v756
        %815 = vmatprep.subr.bf16.mxu0 0
        %816 = vmatpush1.bf16.msra.mxu0 %v757
        %817 = vmatprep.subr.bf16.mxu0 0
        %818 = vmatpush1.bf16.msra.mxu0 %v758
        %819 = vmatprep.subr.bf16.mxu0 0
        %820 = vmatpush1.bf16.msra.mxu0 %v759
        %821 = vmatprep.subr.bf16.mxu0 0
        %822 = vmatpush1.bf16.msra.mxu0 %v760
        %823 = vmatprep.subr.bf16.mxu0 0
        %824 = vmatpush1.bf16.msra.mxu0 %v761
        %825 = vmatprep.subr.bf16.mxu0 0
        %826 = vmatpush1.bf16.msra.mxu0 %v762
        %827 = vmatprep.mubr.bf16.mxu0 %v594
        %828 = vmatmul.mubr.bf16.gmra.mrb[0].mxu0 %v593
        %v829 = vpop.f32.mrb[0].mxu0
        %v830 = vadd.f32 %v649, %v829
        %v831 = vpop.f32.mrb[0].mxu0
        %v832 = vpop.f32.mrb[0].mxu0
        %v833 = vadd.f32 %v649, %v832
        %v834 = vpop.f32.mrb[0].mxu0
        %835 = vdwg.mxu0
        %836 = vmatprep.subr.bf16.mxu0 0
        %837 = vmatpush1.bf16.msra.mxu0 %v763
        %838 = vmatprep.subr.bf16.mxu0 0
        %839 = vmatpush1.bf16.msra.mxu0 %v764
        %840 = vmatprep.subr.bf16.mxu0 0
        %841 = vmatpush1.bf16.msra.mxu0 %v765
        %842 = vmatprep.subr.bf16.mxu0 0
        %843 = vmatpush1.bf16.msra.mxu0 %v766
        %844 = vmatprep.subr.bf16.mxu0 0
        %845 = vmatpush1.bf16.msra.mxu0 %v767
        %846 = vmatprep.subr.bf16.mxu0 0
        %847 = vmatpush1.bf16.msra.mxu0 %v768
        %848 = vmatprep.subr.bf16.mxu0 0
        %849 = vmatpush1.bf16.msra.mxu0 %v769
        %850 = vmatprep.subr.bf16.mxu0 0
        %851 = vmatpush1.bf16.msra.mxu0 %v770
        %852 = vmatprep.subr.bf16.mxu0 0
        %853 = vmatpush1.bf16.msra.mxu0 0
        %854 = vmatprep.subr.bf16.mxu0 0
        %855 = vmatpush1.bf16.msra.mxu0 0
        %856 = vmatprep.subr.bf16.mxu0 0
        %857 = vmatpush1.bf16.msra.mxu0 0
        %858 = vmatprep.subr.bf16.mxu0 0
        %859 = vmatpush1.bf16.msra.mxu0 0
        %860 = vmatprep.subr.bf16.mxu0 0
        %861 = vmatpush1.bf16.msra.mxu0 0
        %862 = vmatprep.subr.bf16.mxu0 0
        %863 = vmatpush1.bf16.msra.mxu0 0
        %864 = vmatprep.subr.bf16.mxu0 0
        %865 = vmatpush1.bf16.msra.mxu0 0
        %866 = vmatprep.subr.bf16.mxu0 0
        %867 = vmatpush1.bf16.msra.mxu0 0
        %868 = vmatprep.mubr.bf16.mxu0 0
        %869 = vmatmul.mubr.bf16.gmra.mrb[0].mxu0 %v595
        %v870 = vpop.f32.mrb[0].mxu0
        %v871 = vadd.f32 %v830, %v870
        %v872 = vpop.f32.mrb[0].mxu0
        %v873 = vpop.f32.mrb[0].mxu0
        %v874 = vadd.f32 %v833, %v873
        %v875 = vpop.f32.mrb[0].mxu0
        %876 = vdwg.mxu0
        %v877 = vadd.f32 %v273, %v871
        %v878 = vadd.f32 %v274, %v874
        %879 = vst [vmem:[%s271] sm:$0xff] %v877
        %880 = vst [vmem:[%s271 + $0x8] sm:$0xff] %v878
        %s881 = sand.u32 %s141, 1
        %s882 = scalar_lea.sflag [#allocation4], %s881
        %s883 = sand.u32 %s141, 1
        %s884 = smul.addr %s883, 16
        %s885 = scalar_lea.vmem [#allocation8], %s884
        // Predicated region
        $region53: #{tpu_custom_call.1} parent=39 // pred_check
          %p886 = pneg %p151
        $region54: #{tpu_custom_call.1} parent=39 // pred_check_branch
          %888 = sbr.rel (%p886) target = $region56
        $region55: #{tpu_custom_call.1} parent=39 // pred_region
          %s890 = ssub.s32 256, 256
          %891 = vsyncadd %s882, %s890
          %s892 = smul.addr %s23, 2
          %s893 = smul.addr %s892, 128
          %s894 = scalar_lea.hbm %s5, %s893
          %s895 = sshll.u32 %s885, 4
          %s896 = int_to_ptr.vmem [resolvable:$true] %s895
          %901 = dma.vmem_to_hbm [thread:$0]  %s896, 256, %s894, %s882, 128, 128, 8
        $region56: #{tpu_custom_call.1} parent=39 // pred_fallthru
          _
      $region40: #{tpu_custom_call.1} parent=5 // pred_fallthru
        _
      %p902 = scmp.le.s32.totalorder 2, %s18
      // Predicated region
      $region57: #{tpu_custom_call.1} parent=5 // pred_check
        %p903 = pneg %p902
      $region58: #{tpu_custom_call.1} parent=5 // pred_check_branch
        %905 = sbr.rel (%p903) target = $region60
      $region59: #{tpu_custom_call.1} parent=5 // pred_region
        %s906 = ssub.s32 %s18, 2
        // Predicated region
        $region61: #{tpu_custom_call.1} parent=59 // pred_check
          %p907 = pneg %p157
        $region62: #{tpu_custom_call.1} parent=59 // pred_check_branch
          %909 = sbr.rel (%p907) target = $region64
        $region63: #{tpu_custom_call.1} parent=59 // pred_region
          %s910 = sand.u32 %s142, 1
          %s911 = scalar_lea.sflag [#allocation4], %s910
          %s912 = sand.u32 %s142, 1
          %s913 = smul.addr %s912, 16
          %s914 = scalar_lea.vmem [#allocation8], %s913
          %915 = dma.done %s911, 256
        $region64: #{tpu_custom_call.1} parent=59 // pred_fallthru
          _
      $region60: #{tpu_custom_call.1} parent=5 // pred_fallthru
        _
    $region6: #{tpu_custom_call.1} parent=1 // loop_footer
      %s22 = sadd.s32 1, %s18
    $region7: #{tpu_custom_call.1} parent=1 // loop_footer_branch
      %17 = sbr.rel target = $region3
    $region8: #{tpu_custom_call.1} parent=1 // loop_exit
      _
    %916 = vsyncpa [#allocation3], 1
    %s917 = scalar_lea.sflag [#allocation3], 1
    %918 = vsyncpa %s917, 1
    %919 = vsyncpa [#allocation6], 1
    %920 = vsyncpa [#allocation4], 1
    %s921 = scalar_lea.sflag [#allocation4], 1
    %922 = vsyncpa %s921, 1

</llo_original>
